<compile_context>
chip_gen: v5e
topology: v5e:2x2
jax: 0.10.0
libtpu: 0.0.40
codegen_flags: <defaults>
</compile_context>

<pallas_src>
import jax
import jax.numpy as jnp
from jax.experimental import pallas as pl
from jax.experimental.pallas import tpu as pltpu


# ----------------------------------------------------------------------------
# Kernel
# ----------------------------------------------------------------------------
def _gnn_cell_kernel(a_in_ref, a_out_ref, h_ref,
                     w_all_ref, b_all_ref, b_gate_ref,
                     out_ref):
    Bt, Np, Hp = h_ref.shape
    G = 3 * Hp                                   # gate width (r|i|n), lane aligned

    h = h_ref[...]                               # (Bt, Np, Hp) f32
    h2 = h.reshape(Bt * Np, Hp)                  # fold (Bt*Np) into MXU M dim

    # One fused matmul for edge-in / edge-out / hidden projections.
    t = jnp.dot(h2.astype(jnp.bfloat16), w_all_ref[...],
                preferred_element_type=jnp.float32) + b_all_ref[...]
    t = t.reshape(Bt, Np, 3 * G)

    t_in = t[..., :G].astype(jnp.bfloat16)       # lane-aligned slices (G % 128 == 0)
    t_out = t[..., G:2 * G].astype(jnp.bfloat16)
    gh = t[..., 2 * G:]                          # (Bt, Np, G) f32

    # Per-batch adjacency matmuls (batched MXU einsum), bf16 in / f32 accum.
    gi = (jnp.einsum('bij,bjk->bik', a_in_ref[...], t_in,
                     preferred_element_type=jnp.float32)
          + jnp.einsum('bij,bjk->bik', a_out_ref[...], t_out,
                       preferred_element_type=jnp.float32)
          + b_gate_ref[...])

    # GRU-style gates (f32 VPU/EUP math).
    i_r, i_i, i_n = gi[..., :Hp], gi[..., Hp:2 * Hp], gi[..., 2 * Hp:]
    h_r, h_i, h_n = gh[..., :Hp], gh[..., Hp:2 * Hp], gh[..., 2 * Hp:]
    resetgate = jax.nn.sigmoid(i_r + h_r)
    inputgate = jax.nn.sigmoid(i_i + h_i)
    newgate = jnp.tanh(i_n + resetgate * h_n)
    hy = h - inputgate * (h - newgate)

    out_ref[...] = hy.astype(out_ref.dtype)      # lane-dense (Hp % 128 == 0) store


# ----------------------------------------------------------------------------
# Wrapper: padding, weight fusion, pallas_call
# ----------------------------------------------------------------------------
def _pad_gate_cols(x, H, Hp):
    """Pad each of the 3 H-wide gate chunks of the last axis to Hp."""
    pads = [(0, 0)] * (x.ndim - 1) + [(0, Hp - H)]
    chunks = [jnp.pad(x[..., g * H:(g + 1) * H], pads) for g in range(3)]
    return jnp.concatenate(chunks, axis=-1)


def fuse_params(params, H, Hp):
    """Fold edge linears + gate projections into one padded bf16 weight slab."""
    w_ih_t = params["w_ih"].T                    # (2H, 3H)
    wih_in, wih_out = w_ih_t[:H], w_ih_t[H:]     # (H, 3H) each
    m_in = params["w_ein"].T @ wih_in            # (H, 3H)
    m_out = params["w_eout"].T @ wih_out
    w_hh_t = params["w_hh"].T                    # (H, 3H)
    c_in = params["b_ein"] @ wih_in              # (3H,)
    c_out = params["b_eout"] @ wih_out
    gate_b = params["b_iah"] @ wih_in + params["b_oah"] @ wih_out + params["b_ih"]

    pad_rows = lambda m: jnp.pad(m, ((0, Hp - H), (0, 0)))
    w_all = jnp.concatenate(
        [_pad_gate_cols(pad_rows(m_in), H, Hp),
         _pad_gate_cols(pad_rows(m_out), H, Hp),
         _pad_gate_cols(pad_rows(w_hh_t), H, Hp)], axis=1).astype(jnp.bfloat16)
    b_all = jnp.concatenate(
        [_pad_gate_cols(c_in, H, Hp),
         _pad_gate_cols(c_out, H, Hp),
         _pad_gate_cols(params["b_hh"], H, Hp)], axis=0)[None, :].astype(jnp.float32)
    b_gate = _pad_gate_cols(gate_b, H, Hp)[None, :].astype(jnp.float32)
    return {"w_all": w_all, "b_all": b_all, "b_gate": b_gate}


def _choose_bt(B, Np, Hp, target_m=256, vmem_budget_bytes=24 << 20):
    """Batch block: aim Bt*Np >= 256 (MXU M fill) within a VMEM budget."""
    bt = max(1, min(B, -(-target_m // Np)))

    def blk_bytes(bt):
        a = 2 * bt * Np * Np * 2                 # two bf16 adjacency blocks
        h = bt * Np * Hp * 4                     # f32 hidden block
        o = bt * Np * Hp * 4                     # f32 output block
        return 2 * (a + h + o)                   # double-buffered

    while bt > 1 and blk_bytes(bt) > vmem_budget_bytes:
        bt -= 1
    return bt


def _gnn_cell_padded(a_in, a_out, hidden_p, fused, *, bt):
    Bp, Np, Hp = hidden_p.shape
    G = 3 * Hp
    full = lambda shape: pl.BlockSpec(shape, lambda b: (0,) * len(shape))
    return pl.pallas_call(
        _gnn_cell_kernel,
        out_shape=jax.ShapeDtypeStruct((Bp, Np, Hp), hidden_p.dtype),
        grid_spec=pltpu.PrefetchScalarGridSpec(
            num_scalar_prefetch=0,
            grid=(Bp // bt,),
            in_specs=[
                pl.BlockSpec((bt, Np, Np), lambda b: (b, 0, 0)),   # A_in  (bf16)
                pl.BlockSpec((bt, Np, Np), lambda b: (b, 0, 0)),   # A_out (bf16)
                pl.BlockSpec((bt, Np, Hp), lambda b: (b, 0, 0)),   # hidden (f32)
                full((Hp, 3 * G)),                                 # fused weights
                full((1, 3 * G)),                                  # fused pre-A bias
                full((1, G)),                                      # fused gate bias
            ],
            out_specs=pl.BlockSpec((bt, Np, Hp), lambda b: (b, 0, 0)),
        ),
        compiler_params=pltpu.CompilerParams(dimension_semantics=("parallel",)),
    )(a_in, a_out, hidden_p, fused["w_all"], fused["b_all"], fused["b_gate"])


def gnn_forward(A, hidden, params, step=1, batch_block=None):
    """SR-GNN GNN.forward: A (B, N, 2N), hidden (B, N, H)."""
    B, N, H = hidden.shape
    assert A.shape == (B, N, 2 * N)
    Hp = ((H + 127) // 128) * 128                # lane-pad feature dim
    Np = ((N + 7) // 8) * 8                      # sublane-pad node dim
    bt = batch_block if batch_block is not None else _choose_bt(B, Np, Hp)
    Bp = ((B + bt - 1) // bt) * bt               # pad batch to a multiple of bt

    fused = fuse_params(params, H, Hp)

    pad3 = lambda x, d2: jnp.pad(
        x, ((0, Bp - B), (0, Np - N), (0, d2 - x.shape[2])))
    a_in = pad3(A[:, :, :N], Np).astype(jnp.bfloat16)
    a_out = pad3(A[:, :, N:2 * N], Np).astype(jnp.bfloat16)
    h_p = pad3(hidden.astype(jnp.float32), Hp)

    for _ in range(step):
        h_p = _gnn_cell_padded(a_in, a_out, h_p, fused, bt=bt)
    return h_p[:B, :N, :H].astype(hidden.dtype)


# ----------------------------------------------------------------------------
# Parameters + pure-JAX reference (mirrors the PyTorch module exactly)
# ----------------------------------------------------------------------------
def init_params(key, hidden_size):
    H = hidden_size
    stdv = 1.0 / (H ** 0.5)
    keys = jax.random.split(key, 10)
    u = lambda k, shape: jax.random.uniform(k, shape, jnp.float32, -stdv, stdv)
    return {
        "w_ih": u(keys[0], (3 * H, 2 * H)),      # PyTorch layout (out, in)
        "w_hh": u(keys[1], (3 * H, H)),
        "b_ih": u(keys[2], (3 * H,)),
        "b_hh": u(keys[3], (3 * H,)),
        "b_iah": u(keys[4], (H,)),
        "b_oah": u(keys[5], (H,)),
        "w_ein": u(keys[6], (H, H)),
        "b_ein": u(keys[7], (H,)),
        "w_eout": u(keys[8], (H, H)),
        "b_eout": u(keys[9], (H,)),
    }


def gnn_cell_ref(A, hidden, p):
    N = A.shape[1]
    eh_in = hidden @ p["w_ein"].T + p["b_ein"]
    eh_out = hidden @ p["w_eout"].T + p["b_eout"]
    input_in = jnp.matmul(A[:, :, :N], eh_in) + p["b_iah"]
    input_out = jnp.matmul(A[:, :, N:2 * N], eh_out) + p["b_oah"]
    inputs = jnp.concatenate([input_in, input_out], axis=2)
    gi = inputs @ p["w_ih"].T + p["b_ih"]
    gh = hidden @ p["w_hh"].T + p["b_hh"]
    i_r, i_i, i_n = jnp.split(gi, 3, axis=2)
    h_r, h_i, h_n = jnp.split(gh, 3, axis=2)
    resetgate = jax.nn.sigmoid(i_r + h_r)
    inputgate = jax.nn.sigmoid(i_i + h_i)
    newgate = jnp.tanh(i_n + resetgate * h_n)
    return hidden - inputgate * (hidden - newgate)


if __name__ == "__main__":
    B, N, H = 2, 8, 32
    step = 1

    key = jax.random.PRNGKey(0)
    k_a, k_h, k_p = jax.random.split(key, 3)

    A = jax.random.uniform(k_a, (B, N, 2 * N), jnp.float32)
    hidden = jax.random.normal(k_h, (B, N, H), jnp.float32)
    params = init_params(k_p, H)

    out = gnn_forward(A, hidden, params, step=step)
    out = jax.block_until_ready(out)

    ref = hidden
    for _ in range(step):
        ref = gnn_cell_ref(A, ref, params)

    # bf16 MXU inputs + weight-product fusion => relaxed (but tight) tolerance.
    assert out.shape == ref.shape
    assert jnp.allclose(out, ref, atol=5e-2, rtol=5e-2), "mismatch vs reference"

    print("KERNEL_OK")
</pallas_src>

<mosaic_0001>
module attributes {stable_mosaic.version = 11 : i64} {
  func.func @_gnn_cell_kernel(%arg0: i32, %arg1: memref<2x8x8xbf16, #tpu.memory_space<vmem>>, %arg2: memref<2x8x8xbf16, #tpu.memory_space<vmem>>, %arg3: memref<2x8x128xf32, #tpu.memory_space<vmem>>, %arg4: memref<128x1152xbf16, #tpu.memory_space<vmem>>, %arg5: memref<1x1152xf32, #tpu.memory_space<vmem>>, %arg6: memref<1x384xf32, #tpu.memory_space<vmem>>, %arg7: memref<2x8x128xf32, #tpu.memory_space<vmem>>) attributes {dimension_semantics = [#tpu.dimension_semantics<parallel>], iteration_bounds = array<i64: 1>, scalar_prefetch = 0 : i64, scratch_operands = 0 : i64, tpu.core_type = #tpu.core_type<tc>, window_params = [{transform_indices = @transform_0, window_bounds = array<i64: 2, 8, 8>}, {transform_indices = @transform_1, window_bounds = array<i64: 2, 8, 8>}, {transform_indices = @transform_2, window_bounds = array<i64: 2, 8, 128>}, {pipeline_mode = #tpu.pipeline_mode<synchronous>, transform_indices = @transform_3, window_bounds = array<i64: 128, 1152>}, {pipeline_mode = #tpu.pipeline_mode<synchronous>, transform_indices = @transform_4, window_bounds = array<i64: 1, 1152>}, {pipeline_mode = #tpu.pipeline_mode<synchronous>, transform_indices = @transform_5, window_bounds = array<i64: 1, 384>}, {transform_indices = @transform_6, window_bounds = array<i64: 2, 8, 128>}]} {
    %c0 = arith.constant 0 : index
    %c0_0 = arith.constant 0 : index
    %c0_1 = arith.constant 0 : index
    %0 = vector.load %arg3[%c0, %c0_0, %c0_1] : memref<2x8x128xf32, #tpu.memory_space<vmem>>, vector<2x8x128xf32>
    %1 = vector.shape_cast %0 : vector<2x8x128xf32> to vector<16x128xf32>
    %2 = arith.truncf %1 : vector<16x128xf32> to vector<16x128xbf16>
    %c0_2 = arith.constant 0 : index
    %c0_3 = arith.constant 0 : index
    %3 = vector.load %arg4[%c0_2, %c0_3] : memref<128x1152xbf16, #tpu.memory_space<vmem>>, vector<128x1152xbf16>
    %cst = arith.constant dense<0.000000e+00> : vector<16x1152xf32>
    %4 = tpu.matmul %2, %3, %cst {dimension_numbers = #tpu.dot_dimension_numbers<[1], [0], [0], [1], [0, 0, 1, 1], [], []>} : vector<16x128xbf16>, vector<128x1152xbf16>, vector<16x1152xf32> -> vector<16x1152xf32>
    %c0_4 = arith.constant 0 : index
    %c0_5 = arith.constant 0 : index
    %5 = vector.load %arg5[%c0_4, %c0_5] : memref<1x1152xf32, #tpu.memory_space<vmem>>, vector<1x1152xf32>
    %6 = vector.broadcast %5 : vector<1x1152xf32> to vector<16x1152xf32>
    %7 = arith.addf %4, %6 : vector<16x1152xf32>
    %8 = vector.shape_cast %7 : vector<16x1152xf32> to vector<2x8x1152xf32>
    %9 = vector.extract_strided_slice %8 {offsets = [0, 0, 0], sizes = [2, 8, 384], strides = [1, 1, 1]} : vector<2x8x1152xf32> to vector<2x8x384xf32>
    %10 = arith.truncf %9 : vector<2x8x384xf32> to vector<2x8x384xbf16>
    %11 = vector.extract_strided_slice %8 {offsets = [0, 0, 384], sizes = [2, 8, 384], strides = [1, 1, 1]} : vector<2x8x1152xf32> to vector<2x8x384xf32>
    %12 = arith.truncf %11 : vector<2x8x384xf32> to vector<2x8x384xbf16>
    %13 = vector.extract_strided_slice %8 {offsets = [0, 0, 768], sizes = [2, 8, 384], strides = [1, 1, 1]} : vector<2x8x1152xf32> to vector<2x8x384xf32>
    %c0_6 = arith.constant 0 : index
    %c0_7 = arith.constant 0 : index
    %c0_8 = arith.constant 0 : index
    %14 = vector.load %arg1[%c0_6, %c0_7, %c0_8] : memref<2x8x8xbf16, #tpu.memory_space<vmem>>, vector<2x8x8xbf16>
    "tpu.trace_start"() <{level = 10 : i32, message = "bij,bjk->bik"}> : () -> ()
    %cst_9 = arith.constant dense<0.000000e+00> : vector<2x8x384xf32>
    %15 = tpu.matmul %14, %10, %cst_9 {dimension_numbers = #tpu.dot_dimension_numbers<[2], [1], [1], [2], [0, 0, 0, 1, 1, 2], [0], [0]>} : vector<2x8x8xbf16>, vector<2x8x384xbf16>, vector<2x8x384xf32> -> vector<2x8x384xf32>
    "tpu.trace_stop"() : () -> ()
    %c0_10 = arith.constant 0 : index
    %c0_11 = arith.constant 0 : index
    %c0_12 = arith.constant 0 : index
    %16 = vector.load %arg2[%c0_10, %c0_11, %c0_12] : memref<2x8x8xbf16, #tpu.memory_space<vmem>>, vector<2x8x8xbf16>
    "tpu.trace_start"() <{level = 10 : i32, message = "bij,bjk->bik"}> : () -> ()
    %cst_13 = arith.constant dense<0.000000e+00> : vector<2x8x384xf32>
    %17 = tpu.matmul %16, %12, %cst_13 {dimension_numbers = #tpu.dot_dimension_numbers<[2], [1], [1], [2], [0, 0, 0, 1, 1, 2], [0], [0]>} : vector<2x8x8xbf16>, vector<2x8x384xbf16>, vector<2x8x384xf32> -> vector<2x8x384xf32>
    "tpu.trace_stop"() : () -> ()
    %18 = arith.addf %15, %17 : vector<2x8x384xf32>
    %c0_14 = arith.constant 0 : index
    %c0_15 = arith.constant 0 : index
    %19 = vector.load %arg6[%c0_14, %c0_15] : memref<1x384xf32, #tpu.memory_space<vmem>>, vector<1x384xf32>
    %20 = vector.shape_cast %19 : vector<1x384xf32> to vector<1x1x384xf32>
    %21 = vector.broadcast %20 : vector<1x1x384xf32> to vector<2x8x384xf32>
    %22 = arith.addf %18, %21 : vector<2x8x384xf32>
    %23 = vector.extract_strided_slice %22 {offsets = [0, 0, 0], sizes = [2, 8, 128], strides = [1, 1, 1]} : vector<2x8x384xf32> to vector<2x8x128xf32>
    %24 = vector.extract_strided_slice %22 {offsets = [0, 0, 128], sizes = [2, 8, 128], strides = [1, 1, 1]} : vector<2x8x384xf32> to vector<2x8x128xf32>
    %25 = vector.extract_strided_slice %22 {offsets = [0, 0, 256], sizes = [2, 8, 128], strides = [1, 1, 1]} : vector<2x8x384xf32> to vector<2x8x128xf32>
    %26 = vector.extract_strided_slice %13 {offsets = [0, 0, 0], sizes = [2, 8, 128], strides = [1, 1, 1]} : vector<2x8x384xf32> to vector<2x8x128xf32>
    %27 = vector.extract_strided_slice %13 {offsets = [0, 0, 128], sizes = [2, 8, 128], strides = [1, 1, 1]} : vector<2x8x384xf32> to vector<2x8x128xf32>
    %28 = vector.extract_strided_slice %13 {offsets = [0, 0, 256], sizes = [2, 8, 128], strides = [1, 1, 1]} : vector<2x8x384xf32> to vector<2x8x128xf32>
    %29 = arith.addf %23, %26 : vector<2x8x128xf32>
    %30 = arith.negf %29 : vector<2x8x128xf32>
    %31 = math.exp %30 : vector<2x8x128xf32>
    %cst_16 = arith.constant 1.000000e+00 : f32
    %32 = vector.broadcast %cst_16 : f32 to vector<2x8x128xf32>
    %33 = arith.addf %32, %31 : vector<2x8x128xf32>
    %34 = arith.divf %32, %33 : vector<2x8x128xf32>
    %35 = arith.addf %24, %27 : vector<2x8x128xf32>
    %36 = arith.negf %35 : vector<2x8x128xf32>
    %37 = math.exp %36 : vector<2x8x128xf32>
    %cst_17 = arith.constant 1.000000e+00 : f32
    %38 = vector.broadcast %cst_17 : f32 to vector<2x8x128xf32>
    %39 = arith.addf %38, %37 : vector<2x8x128xf32>
    %40 = arith.divf %38, %39 : vector<2x8x128xf32>
    %41 = arith.mulf %34, %28 : vector<2x8x128xf32>
    %42 = arith.addf %25, %41 : vector<2x8x128xf32>
    %43 = math.tanh %42 : vector<2x8x128xf32>
    %44 = arith.subf %0, %43 : vector<2x8x128xf32>
    %45 = arith.mulf %40, %44 : vector<2x8x128xf32>
    %46 = arith.subf %0, %45 : vector<2x8x128xf32>
    %c0_18 = arith.constant 0 : index
    %c0_19 = arith.constant 0 : index
    %c0_20 = arith.constant 0 : index
    %47 = vector.load %arg7[%c0_18, %c0_19, %c0_20] : memref<2x8x128xf32, #tpu.memory_space<vmem>>, vector<2x8x128xf32>
    tpu.vector_store %arg7[%c0_18, %c0_19, %c0_20], %46 {strides = array<i32>} : memref<2x8x128xf32, #tpu.memory_space<vmem>>, vector<2x8x128xf32>,
    return
  }
  func.func @transform_0(%arg0: i32) -> (i32, i32, i32) {
    %c0_i32 = arith.constant 0 : i32
    %c0_i32_0 = arith.constant 0 : i32
    %c0_i32_1 = arith.constant 0 : i32
    return %arg0, %c0_i32, %c0_i32_0 : i32, i32, i32
  }
  func.func @transform_1(%arg0: i32) -> (i32, i32, i32) {
    %c0_i32 = arith.constant 0 : i32
    %c0_i32_0 = arith.constant 0 : i32
    %c0_i32_1 = arith.constant 0 : i32
    return %arg0, %c0_i32, %c0_i32_0 : i32, i32, i32
  }
  func.func @transform_2(%arg0: i32) -> (i32, i32, i32) {
    %c0_i32 = arith.constant 0 : i32
    %c0_i32_0 = arith.constant 0 : i32
    %c0_i32_1 = arith.constant 0 : i32
    return %arg0, %c0_i32, %c0_i32_0 : i32, i32, i32
  }
  func.func @transform_3(%arg0: i32) -> (i32, i32) {
    %c0_i32 = arith.constant 0 : i32
    %c0_i32_0 = arith.constant 0 : i32
    %c0_i32_1 = arith.constant 0 : i32
    return %c0_i32, %c0_i32_0 : i32, i32
  }
  func.func @transform_4(%arg0: i32) -> (i32, i32) {
    %c0_i32 = arith.constant 0 : i32
    %c0_i32_0 = arith.constant 0 : i32
    %c0_i32_1 = arith.constant 0 : i32
    return %c0_i32, %c0_i32_0 : i32, i32
  }
  func.func @transform_5(%arg0: i32) -> (i32, i32) {
    %c0_i32 = arith.constant 0 : i32
    %c0_i32_0 = arith.constant 0 : i32
    %c0_i32_1 = arith.constant 0 : i32
    return %c0_i32, %c0_i32_0 : i32, i32
  }
  func.func @transform_6(%arg0: i32) -> (i32, i32, i32) {
    %c0_i32 = arith.constant 0 : i32
    %c0_i32_0 = arith.constant 0 : i32
    %c0_i32_1 = arith.constant 0 : i32
    return %arg0, %c0_i32, %c0_i32_0 : i32, i32, i32
  }
}

</mosaic_0001>

<llo_original>
// kernel: tpu_custom_call.1
$region0: #{tpu_custom_call.1}
  #allocation0 [shape = 'u32[]', space=smem, size = 0x4, offset = 0x4, fixed_abs, tag = 'smem constant byte address 0x4 - core index']
  #allocation1 [shape = 'u32[72,128]{1,0:T(1,128)}', space=vmem, size = 0x9000, scoped, tag = 'internal scratch']
  %s0 = inlined_call_operand.hbm [shape: bf16[2,8,8], index: 0, kind: input, shape index: {}]
  %s1 = inlined_call_operand.hbm [shape: bf16[2,8,8], index: 1, kind: input, shape index: {}]
  %s2 = inlined_call_operand.hbm [shape: f32[2,8,128], index: 2, kind: input, shape index: {}]
  %s3 = inlined_call_operand.hbm [shape: bf16[128,1152], index: 3, kind: input, shape index: {}]
  %s4 = inlined_call_operand.hbm [shape: f32[1,1152], index: 4, kind: input, shape index: {}]
  %s5 = inlined_call_operand.vmem [shape: f32[1,384], index: 5, kind: input, shape index: {}]
  %s6 = inlined_call_operand.hbm [shape: f32[2,8,128], index: 6, kind: output, shape index: {}]
  %s7 = sld [smem:[#allocation0]]
  $region54: #{tpu_custom_call.1} parent=0
    _
  %s9 = ssub.s32 1, %s7
  %s10 = scalar_select 0, %s9, %s7
  $region1: #{tpu_custom_call.1} parent=0
    #allocation2 [shape = 'u8[4096]{0}', space=vmem, size = 0x1000, scoped, tag = 'input window, operand 0, single buffered']
    #allocation3 [shape = 's32[1]{0}', space=sflag, size = 0x4, scoped, tag = 'scoped memory for tpu_custom_call.1']
    #allocation4 [shape = 's32[1]{0}', space=sflag, size = 0x4, scoped, tag = 'scoped memory for tpu_custom_call.1']
    #allocation5 [shape = 'u8[4096]{0}', space=vmem, size = 0x1000, scoped, tag = 'input window, operand 1, single buffered']
    #allocation6 [shape = 's32[1]{0}', space=sflag, size = 0x4, scoped, tag = 'scoped memory for tpu_custom_call.1']
    #allocation7 [shape = 'u8[8192]{0}', space=vmem, size = 0x2000, scoped, tag = 'input window, operand 2, single buffered']
    #allocation8 [shape = 'u8[294912]{0}', space=vmem, size = 0x48000, scoped, tag = 'input window, operand 3, single buffered']
    #allocation9 [shape = 's32[1]{0}', space=sflag, size = 0x4, scoped, tag = 'scoped memory for tpu_custom_call.1']
    #allocation10 [shape = 'u8[4608]{0}', space=vmem, size = 0x1400, scoped, tag = 'input window, operand 4, single buffered']
    #allocation11 [shape = 'u8[8192]{0}', space=vmem, size = 0x2000, scoped, tag = 'output window, operand 0, single buffered']
    %11 = vsyncpa [#allocation3], 0
    %12 = vsyncpa [#allocation6], 0
    %13 = vsyncpa [#allocation9], 0
    %14 = vsyncpa [#allocation4], 0
    // Predicated region
    $region2: #{tpu_custom_call.1} parent=1 // pred_check
      _
    $region3: #{tpu_custom_call.1} parent=1 // pred_check_branch
      %16 = sbr.rel (0) target = $region5
    $region4: #{tpu_custom_call.1} parent=1 // pred_region
      %18 = vsyncadd [#allocation3], 0
      %s19 = sshll.u32 %s0, 4
      %s20 = int_to_ptr.hbm [resolvable:$true] %s19
      %s21 = sshll.u32 [#allocation2], 4
      %s22 = int_to_ptr.vmem [resolvable:$true] %s21
      %27 = dma.hbm_to_vmem [thread:$0]  %s20, 128, %s22, [#allocation3], 64, 64, 4
    $region5: #{tpu_custom_call.1} parent=1 // pred_fallthru
      _
    // Predicated region
    $region6: #{tpu_custom_call.1} parent=1 // pred_check
      _
    $region7: #{tpu_custom_call.1} parent=1 // pred_check_branch
      %29 = sbr.rel (0) target = $region9
    $region8: #{tpu_custom_call.1} parent=1 // pred_region
      %31 = vsyncadd [#allocation6], 0
      %s32 = sshll.u32 %s1, 4
      %s33 = int_to_ptr.hbm [resolvable:$true] %s32
      %s34 = sshll.u32 [#allocation5], 4
      %s35 = int_to_ptr.vmem [resolvable:$true] %s34
      %40 = dma.hbm_to_vmem [thread:$0]  %s33, 128, %s35, [#allocation6], 64, 64, 4
    $region9: #{tpu_custom_call.1} parent=1 // pred_fallthru
      _
    // Predicated region
    $region10: #{tpu_custom_call.1} parent=1 // pred_check
      _
    $region11: #{tpu_custom_call.1} parent=1 // pred_check_branch
      %42 = sbr.rel (0) target = $region13
    $region12: #{tpu_custom_call.1} parent=1 // pred_region
      %44 = vsyncadd [#allocation6], 0
      %s45 = sshll.u32 %s2, 4
      %s46 = int_to_ptr.hbm [resolvable:$true] %s45
      %s47 = sshll.u32 [#allocation7], 4
      %s48 = int_to_ptr.vmem [resolvable:$true] %s47
      %53 = dma.hbm_to_vmem [thread:$0]  %s46, 256, %s48, [#allocation6], 128, 128, 8
    $region13: #{tpu_custom_call.1} parent=1 // pred_fallthru
      _
    // Predicated region
    $region14: #{tpu_custom_call.1} parent=1 // pred_check
      _
    $region15: #{tpu_custom_call.1} parent=1 // pred_check_branch
      %55 = sbr.rel (0) target = $region17
    $region16: #{tpu_custom_call.1} parent=1 // pred_region
      %57 = vsyncadd [#allocation9], 0
      %s58 = sshll.u32 %s3, 4
      %s59 = int_to_ptr.hbm [resolvable:$true] %s58
      %s60 = sshll.u32 [#allocation8], 4
      %s61 = int_to_ptr.vmem [resolvable:$true] %s60
      %66 = dma.hbm_to_vmem [thread:$0]  %s59, 9216, %s61, [#allocation9], 576, 576, 36
    $region17: #{tpu_custom_call.1} parent=1 // pred_fallthru
      _
    // Predicated region
    $region18: #{tpu_custom_call.1} parent=1 // pred_check
      _
    $region19: #{tpu_custom_call.1} parent=1 // pred_check_branch
      %68 = sbr.rel (0) target = $region21
    $region20: #{tpu_custom_call.1} parent=1 // pred_region
      %70 = vsyncadd [#allocation9], 0
      %s72 = sshll.u32 %s4, 4
      %s73 = int_to_ptr.hbm [resolvable:$true] %s72
      %s74 = sshll.u32 [#allocation10], 4
      %s75 = int_to_ptr.vmem [resolvable:$true] %s74
      %77 = dma.hbm_to_vmem [thread:$0]  %s73, 144, %s75, [#allocation9]
    $region21: #{tpu_custom_call.1} parent=1 // pred_fallthru
      _
    // Predicated region
    $region22: #{tpu_custom_call.1} parent=1 // pred_check
      _
    $region23: #{tpu_custom_call.1} parent=1 // pred_check_branch
      %79 = sbr.rel (0) target = $region25
    $region24: #{tpu_custom_call.1} parent=1 // pred_region
      _
    $region25: #{tpu_custom_call.1} parent=1 // pred_fallthru
      _
    // Predicated region
    $region26: #{tpu_custom_call.1} parent=1 // pred_check
      _
    $region27: #{tpu_custom_call.1} parent=1 // pred_check_branch
      %81 = sbr.rel (0) target = $region29
    $region28: #{tpu_custom_call.1} parent=1 // pred_region
      %83 = dma.done [#allocation3], 128
    $region29: #{tpu_custom_call.1} parent=1 // pred_fallthru
      _
    // Predicated region
    $region30: #{tpu_custom_call.1} parent=1 // pred_check
      _
    $region31: #{tpu_custom_call.1} parent=1 // pred_check_branch
      %85 = sbr.rel (0) target = $region33
    $region32: #{tpu_custom_call.1} parent=1 // pred_region
      %87 = dma.done [#allocation6], 128
    $region33: #{tpu_custom_call.1} parent=1 // pred_fallthru
      _
    // Predicated region
    $region34: #{tpu_custom_call.1} parent=1 // pred_check
      _
    $region35: #{tpu_custom_call.1} parent=1 // pred_check_branch
      %89 = sbr.rel (0) target = $region37
    $region36: #{tpu_custom_call.1} parent=1 // pred_region
      %91 = dma.done [#allocation6], 256
    $region37: #{tpu_custom_call.1} parent=1 // pred_fallthru
      _
    // Predicated region
    $region38: #{tpu_custom_call.1} parent=1 // pred_check
      _
    $region39: #{tpu_custom_call.1} parent=1 // pred_check_branch
      %93 = sbr.rel (0) target = $region41
    $region40: #{tpu_custom_call.1} parent=1 // pred_region
      %95 = dma.done [#allocation9], 9216
    $region41: #{tpu_custom_call.1} parent=1 // pred_fallthru
      _
    // Predicated region
    $region42: #{tpu_custom_call.1} parent=1 // pred_check
      _
    $region43: #{tpu_custom_call.1} parent=1 // pred_check_branch
      %97 = sbr.rel (0) target = $region45
    $region44: #{tpu_custom_call.1} parent=1 // pred_region
      %99 = dma.done [#allocation9], 144
    $region45: #{tpu_custom_call.1} parent=1 // pred_fallthru
      _
    %v101 = vld [vmem:[#allocation7] sm:$0xff]
    %v102 = vld [vmem:[#allocation7 + $0x8] sm:$0xff]
    %v103 = vpack.c.bf16 %v102, %v101
    %v104 = vld [vmem:[#allocation8] sm:$0xff]
    %v105 = vld [vmem:[#allocation8 + $0x8] sm:$0xff]
    %v106 = vld [vmem:[#allocation8 + $0x10] sm:$0xff]
    %v107 = vld [vmem:[#allocation8 + $0x18] sm:$0xff]
    %v108 = vld [vmem:[#allocation8 + $0x20] sm:$0xf]
    %v109 = vld [vmem:[#allocation8 + $0x24] sm:$0xff]
    %v110 = vld [vmem:[#allocation8 + $0x2c] sm:$0xff]
    %v111 = vld [vmem:[#allocation8 + $0x34] sm:$0xff]
    %v112 = vld [vmem:[#allocation8 + $0x3c] sm:$0xff]
    %v113 = vld [vmem:[#allocation8 + $0x44] sm:$0xf]
    %v114 = vld [vmem:[#allocation8 + $0x48] sm:$0xff]
    %v115 = vld [vmem:[#allocation8 + $0x50] sm:$0xff]
    %v116 = vld [vmem:[#allocation8 + $0x58] sm:$0xff]
    %v117 = vld [vmem:[#allocation8 + $0x60] sm:$0xff]
    %v118 = vld [vmem:[#allocation8 + $0x68] sm:$0xf]
    %v119 = vld [vmem:[#allocation8 + $0x6c] sm:$0xff]
    %v120 = vld [vmem:[#allocation8 + $0x74] sm:$0xff]
    %v121 = vld [vmem:[#allocation8 + $0x7c] sm:$0xff]
    %v122 = vld [vmem:[#allocation8 + $0x84] sm:$0xff]
    %v123 = vld [vmem:[#allocation8 + $0x8c] sm:$0xf]
    %v124 = vld [vmem:[#allocation8 + $0x90] sm:$0xff]
    %v125 = vld [vmem:[#allocation8 + $0x98] sm:$0xff]
    %v126 = vld [vmem:[#allocation8 + $0xa0] sm:$0xff]
    %v127 = vld [vmem:[#allocation8 + $0xa8] sm:$0xff]
    %v128 = vld [vmem:[#allocation8 + $0xb0] sm:$0xf]
    %v129 = vld [vmem:[#allocation8 + $0xb4] sm:$0xff]
    %v130 = vld [vmem:[#allocation8 + $0xbc] sm:$0xff]
    %v131 = vld [vmem:[#allocation8 + $0xc4] sm:$0xff]
    %v132 = vld [vmem:[#allocation8 + $0xcc] sm:$0xff]
    %v133 = vld [vmem:[#allocation8 + $0xd4] sm:$0xf]
    %v134 = vld [vmem:[#allocation8 + $0xd8] sm:$0xff]
    %v135 = vld [vmem:[#allocation8 + $0xe0] sm:$0xff]
    %v136 = vld [vmem:[#allocation8 + $0xe8] sm:$0xff]
    %v137 = vld [vmem:[#allocation8 + $0xf0] sm:$0xff]
    %v138 = vld [vmem:[#allocation8 + $0xf8] sm:$0xf]
    %v139 = vld [vmem:[#allocation8 + $0xfc] sm:$0xff]
    %v140 = vld [vmem:[#allocation8 + $0x104] sm:$0xff]
    %v141 = vld [vmem:[#allocation8 + $0x10c] sm:$0xff]
    %v142 = vld [vmem:[#allocation8 + $0x114] sm:$0xff]
    %v143 = vld [vmem:[#allocation8 + $0x11c] sm:$0xf]
    %v144 = vld [vmem:[#allocation8 + $0x120] sm:$0xff]
    %v145 = vld [vmem:[#allocation8 + $0x128] sm:$0xff]
    %v146 = vld [vmem:[#allocation8 + $0x130] sm:$0xff]
    %v147 = vld [vmem:[#allocation8 + $0x138] sm:$0xff]
    %v148 = vld [vmem:[#allocation8 + $0x140] sm:$0xf]
    %v149 = vld [vmem:[#allocation8 + $0x144] sm:$0xff]
    %v150 = vld [vmem:[#allocation8 + $0x14c] sm:$0xff]
    %v151 = vld [vmem:[#allocation8 + $0x154] sm:$0xff]
    %v152 = vld [vmem:[#allocation8 + $0x15c] sm:$0xff]
    %v153 = vld [vmem:[#allocation8 + $0x164] sm:$0xf]
    %v154 = vld [vmem:[#allocation8 + $0x168] sm:$0xff]
    %v155 = vld [vmem:[#allocation8 + $0x170] sm:$0xff]
    %v156 = vld [vmem:[#allocation8 + $0x178] sm:$0xff]
    %v157 = vld [vmem:[#allocation8 + $0x180] sm:$0xff]
    %v158 = vld [vmem:[#allocation8 + $0x188] sm:$0xf]
    %v159 = vld [vmem:[#allocation8 + $0x18c] sm:$0xff]
    %v160 = vld [vmem:[#allocation8 + $0x194] sm:$0xff]
    %v161 = vld [vmem:[#allocation8 + $0x19c] sm:$0xff]
    %v162 = vld [vmem:[#allocation8 + $0x1a4] sm:$0xff]
    %v163 = vld [vmem:[#allocation8 + $0x1ac] sm:$0xf]
    %v164 = vld [vmem:[#allocation8 + $0x1b0] sm:$0xff]
    %v165 = vld [vmem:[#allocation8 + $0x1b8] sm:$0xff]
    %v166 = vld [vmem:[#allocation8 + $0x1c0] sm:$0xff]
    %v167 = vld [vmem:[#allocation8 + $0x1c8] sm:$0xff]
    %v168 = vld [vmem:[#allocation8 + $0x1d0] sm:$0xf]
    %v169 = vld [vmem:[#allocation8 + $0x1d4] sm:$0xff]
    %v170 = vld [vmem:[#allocation8 + $0x1dc] sm:$0xff]
    %v171 = vld [vmem:[#allocation8 + $0x1e4] sm:$0xff]
    %v172 = vld [vmem:[#allocation8 + $0x1ec] sm:$0xff]
    %v173 = vld [vmem:[#allocation8 + $0x1f4] sm:$0xf]
    %v174 = vld [vmem:[#allocation8 + $0x1f8] sm:$0xff]
    %v175 = vld [vmem:[#allocation8 + $0x200] sm:$0xff]
    %v176 = vld [vmem:[#allocation8 + $0x208] sm:$0xff]
    %v177 = vld [vmem:[#allocation8 + $0x210] sm:$0xff]
    %v178 = vld [vmem:[#allocation8 + $0x218] sm:$0xf]
    %v179 = vld [vmem:[#allocation8 + $0x21c] sm:$0xff]
    %v180 = vld [vmem:[#allocation8 + $0x224] sm:$0xff]
    %v181 = vld [vmem:[#allocation8 + $0x22c] sm:$0xff]
    %v182 = vld [vmem:[#allocation8 + $0x234] sm:$0xff]
    %v183 = vld [vmem:[#allocation8 + $0x23c] sm:$0xf]
    %v184 = vld [vmem:[#allocation10] sm:$0xff]
    %v185 = vld [vmem:[#allocation10 + $0x8] sm:$0x1]
    %v188 = vperm.slane %v184, 0
    %v189 = vperm.slane %v184, 1
    %v190 = vperm.slane %v184, 2
    %v191 = vperm.slane %v184, 3
    %v192 = vperm.slane %v184, 4
    %v193 = vperm.slane %v184, 5
    %v194 = vperm.slane %v184, 6
    %v195 = vperm.slane %v184, 7
    %v196 = vperm.slane %v185, 0
    %v286 = vunpack.c.l.b16 %v104
    %v287 = vunpack.c.h.b16 %v104
    %v288 = vunpack.c.l.b16 %v105
    %v289 = vunpack.c.h.b16 %v105
    %v290 = vunpack.c.l.b16 %v106
    %v291 = vunpack.c.h.b16 %v106
    %v292 = vunpack.c.l.b16 %v107
    %v293 = vunpack.c.h.b16 %v107
    %v294 = vunpack.c.l.b16 %v108
    %v295 = vunpack.c.l.b16 %v109
    %v296 = vunpack.c.h.b16 %v109
    %v297 = vunpack.c.l.b16 %v110
    %v298 = vunpack.c.h.b16 %v110
    %v299 = vunpack.c.l.b16 %v111
    %v300 = vunpack.c.h.b16 %v111
    %v301 = vunpack.c.l.b16 %v112
    %v302 = vunpack.c.h.b16 %v112
    %v303 = vunpack.c.l.b16 %v113
    %v304 = vunpack.c.l.b16 %v114
    %v305 = vunpack.c.h.b16 %v114
    %v306 = vunpack.c.l.b16 %v115
    %v307 = vunpack.c.h.b16 %v115
    %v308 = vunpack.c.l.b16 %v116
    %v309 = vunpack.c.h.b16 %v116
    %v310 = vunpack.c.l.b16 %v117
    %v311 = vunpack.c.h.b16 %v117
    %v312 = vunpack.c.l.b16 %v118
    %v313 = vunpack.c.l.b16 %v119
    %v314 = vunpack.c.h.b16 %v119
    %v315 = vunpack.c.l.b16 %v120
    %v316 = vunpack.c.h.b16 %v120
    %v317 = vunpack.c.l.b16 %v121
    %v318 = vunpack.c.h.b16 %v121
    %v319 = vunpack.c.l.b16 %v122
    %v320 = vunpack.c.h.b16 %v122
    %v321 = vunpack.c.l.b16 %v123
    %v322 = vunpack.c.l.b16 %v124
    %v323 = vunpack.c.h.b16 %v124
    %v324 = vunpack.c.l.b16 %v125
    %v325 = vunpack.c.h.b16 %v125
    %v326 = vunpack.c.l.b16 %v126
    %v327 = vunpack.c.h.b16 %v126
    %v328 = vunpack.c.l.b16 %v127
    %v329 = vunpack.c.h.b16 %v127
    %v330 = vunpack.c.l.b16 %v128
    %v331 = vunpack.c.l.b16 %v129
    %v332 = vunpack.c.h.b16 %v129
    %v333 = vunpack.c.l.b16 %v130
    %v334 = vunpack.c.h.b16 %v130
    %v335 = vunpack.c.l.b16 %v131
    %v336 = vunpack.c.h.b16 %v131
    %v337 = vunpack.c.l.b16 %v132
    %v338 = vunpack.c.h.b16 %v132
    %v339 = vunpack.c.l.b16 %v133
    %v340 = vunpack.c.l.b16 %v134
    %v341 = vunpack.c.h.b16 %v134
    %v342 = vunpack.c.l.b16 %v135
    %v343 = vunpack.c.h.b16 %v135
    %v344 = vunpack.c.l.b16 %v136
    %v345 = vunpack.c.h.b16 %v136
    %v346 = vunpack.c.l.b16 %v137
    %v347 = vunpack.c.h.b16 %v137
    %v348 = vunpack.c.l.b16 %v138
    %v349 = vunpack.c.l.b16 %v139
    %v350 = vunpack.c.h.b16 %v139
    %v351 = vunpack.c.l.b16 %v140
    %v352 = vunpack.c.h.b16 %v140
    %v353 = vunpack.c.l.b16 %v141
    %v354 = vunpack.c.h.b16 %v141
    %v355 = vunpack.c.l.b16 %v142
    %v356 = vunpack.c.h.b16 %v142
    %v357 = vunpack.c.l.b16 %v143
    %v358 = vunpack.c.l.b16 %v144
    %v359 = vunpack.c.h.b16 %v144
    %v360 = vunpack.c.l.b16 %v145
    %v361 = vunpack.c.h.b16 %v145
    %v362 = vunpack.c.l.b16 %v146
    %v363 = vunpack.c.h.b16 %v146
    %v364 = vunpack.c.l.b16 %v147
    %v365 = vunpack.c.h.b16 %v147
    %v366 = vunpack.c.l.b16 %v148
    %v367 = vunpack.c.l.b16 %v149
    %v368 = vunpack.c.h.b16 %v149
    %v369 = vunpack.c.l.b16 %v150
    %v370 = vunpack.c.h.b16 %v150
    %v371 = vunpack.c.l.b16 %v151
    %v372 = vunpack.c.h.b16 %v151
    %v373 = vunpack.c.l.b16 %v152
    %v374 = vunpack.c.h.b16 %v152
    %v375 = vunpack.c.l.b16 %v153
    %v376 = vunpack.c.l.b16 %v154
    %v377 = vunpack.c.h.b16 %v154
    %v378 = vunpack.c.l.b16 %v155
    %v379 = vunpack.c.h.b16 %v155
    %v380 = vunpack.c.l.b16 %v156
    %v381 = vunpack.c.h.b16 %v156
    %v382 = vunpack.c.l.b16 %v157
    %v383 = vunpack.c.h.b16 %v157
    %v384 = vunpack.c.l.b16 %v158
    %v385 = vunpack.c.l.b16 %v159
    %v386 = vunpack.c.h.b16 %v159
    %v387 = vunpack.c.l.b16 %v160
    %v388 = vunpack.c.h.b16 %v160
    %v389 = vunpack.c.l.b16 %v161
    %v390 = vunpack.c.h.b16 %v161
    %v391 = vunpack.c.l.b16 %v162
    %v392 = vunpack.c.h.b16 %v162
    %v393 = vunpack.c.l.b16 %v163
    %v394 = vunpack.c.l.b16 %v164
    %v395 = vunpack.c.h.b16 %v164
    %v396 = vunpack.c.l.b16 %v165
    %v397 = vunpack.c.h.b16 %v165
    %v398 = vunpack.c.l.b16 %v166
    %v399 = vunpack.c.h.b16 %v166
    %v400 = vunpack.c.l.b16 %v167
    %v401 = vunpack.c.h.b16 %v167
    %v402 = vunpack.c.l.b16 %v168
    %v403 = vunpack.c.l.b16 %v169
    %v404 = vunpack.c.h.b16 %v169
    %v405 = vunpack.c.l.b16 %v170
    %v406 = vunpack.c.h.b16 %v170
    %v407 = vunpack.c.l.b16 %v171
    %v408 = vunpack.c.h.b16 %v171
    %v409 = vunpack.c.l.b16 %v172
    %v410 = vunpack.c.h.b16 %v172
    %v411 = vunpack.c.l.b16 %v173
    %v412 = vunpack.c.l.b16 %v174
    %v413 = vunpack.c.h.b16 %v174
    %v414 = vunpack.c.l.b16 %v175
    %v415 = vunpack.c.h.b16 %v175
    %v416 = vunpack.c.l.b16 %v176
    %v417 = vunpack.c.h.b16 %v176
    %v418 = vunpack.c.l.b16 %v177
    %v419 = vunpack.c.h.b16 %v177
    %v420 = vunpack.c.l.b16 %v178
    %v421 = vunpack.c.l.b16 %v179
    %v422 = vunpack.c.h.b16 %v179
    %v423 = vunpack.c.l.b16 %v180
    %v424 = vunpack.c.h.b16 %v180
    %v425 = vunpack.c.l.b16 %v181
    %v426 = vunpack.c.h.b16 %v181
    %v427 = vunpack.c.l.b16 %v182
    %v428 = vunpack.c.h.b16 %v182
    %v429 = vunpack.c.l.b16 %v183
    %v430 = vpack.c.b16 %v295, %v286
    %v431 = vpack.c.b16 %v296, %v287
    %v432 = vpack.c.b16 %v297, %v288
    %v433 = vpack.c.b16 %v298, %v289
    %v434 = vpack.c.b16 %v299, %v290
    %v435 = vpack.c.b16 %v300, %v291
    %v436 = vpack.c.b16 %v301, %v292
    %v437 = vpack.c.b16 %v302, %v293
    %v438 = vpack.c.b16 %v303, %v294
    %v439 = vpack.c.b16 %v313, %v304
    %v440 = vpack.c.b16 %v314, %v305
    %v441 = vpack.c.b16 %v315, %v306
    %v442 = vpack.c.b16 %v316, %v307
    %v443 = vpack.c.b16 %v317, %v308
    %v444 = vpack.c.b16 %v318, %v309
    %v445 = vpack.c.b16 %v319, %v310
    %v446 = vpack.c.b16 %v320, %v311
    %v447 = vpack.c.b16 %v321, %v312
    %v448 = vpack.c.b16 %v331, %v322
    %v449 = vpack.c.b16 %v332, %v323
    %v450 = vpack.c.b16 %v333, %v324
    %v451 = vpack.c.b16 %v334, %v325
    %v452 = vpack.c.b16 %v335, %v326
    %v453 = vpack.c.b16 %v336, %v327
    %v454 = vpack.c.b16 %v337, %v328
    %v455 = vpack.c.b16 %v338, %v329
    %v456 = vpack.c.b16 %v339, %v330
    %v457 = vpack.c.b16 %v349, %v340
    %v458 = vpack.c.b16 %v350, %v341
    %v459 = vpack.c.b16 %v351, %v342
    %v460 = vpack.c.b16 %v352, %v343
    %v461 = vpack.c.b16 %v353, %v344
    %v462 = vpack.c.b16 %v354, %v345
    %v463 = vpack.c.b16 %v355, %v346
    %v464 = vpack.c.b16 %v356, %v347
    %v465 = vpack.c.b16 %v357, %v348
    %v466 = vpack.c.b16 %v367, %v358
    %v467 = vpack.c.b16 %v368, %v359
    %v468 = vpack.c.b16 %v369, %v360
    %v469 = vpack.c.b16 %v370, %v361
    %v470 = vpack.c.b16 %v371, %v362
    %v471 = vpack.c.b16 %v372, %v363
    %v472 = vpack.c.b16 %v373, %v364
    %v473 = vpack.c.b16 %v374, %v365
    %v474 = vpack.c.b16 %v375, %v366
    %v475 = vpack.c.b16 %v385, %v376
    %v476 = vpack.c.b16 %v386, %v377
    %v477 = vpack.c.b16 %v387, %v378
    %v478 = vpack.c.b16 %v388, %v379
    %v479 = vpack.c.b16 %v389, %v380
    %v480 = vpack.c.b16 %v390, %v381
    %v481 = vpack.c.b16 %v391, %v382
    %v482 = vpack.c.b16 %v392, %v383
    %v483 = vpack.c.b16 %v393, %v384
    %v484 = vpack.c.b16 %v403, %v394
    %v485 = vpack.c.b16 %v404, %v395
    %v486 = vpack.c.b16 %v405, %v396
    %v487 = vpack.c.b16 %v406, %v397
    %v488 = vpack.c.b16 %v407, %v398
    %v489 = vpack.c.b16 %v408, %v399
    %v490 = vpack.c.b16 %v409, %v400
    %v491 = vpack.c.b16 %v410, %v401
    %v492 = vpack.c.b16 %v411, %v402
    %v493 = vpack.c.b16 %v421, %v412
    %v494 = vpack.c.b16 %v422, %v413
    %v495 = vpack.c.b16 %v423, %v414
    %v496 = vpack.c.b16 %v424, %v415
    %v497 = vpack.c.b16 %v425, %v416
    %v498 = vpack.c.b16 %v426, %v417
    %v499 = vpack.c.b16 %v427, %v418
    %v500 = vpack.c.b16 %v428, %v419
    %v501 = vpack.c.b16 %v429, %v420
    %574 = vmatpush.bf16.msra.mxu0 %v493
    %575 = vmatpush.bf16.msra.mxu0 %v484
    %576 = vmatpush.bf16.msra.mxu0 %v475
    %577 = vmatpush.bf16.msra.mxu0 %v466
    %578 = vmatpush.bf16.msra.mxu0 %v457
    %579 = vmatpush.bf16.msra.mxu0 %v448
    %580 = vmatpush.bf16.msra.mxu0 %v439
    %581 = vmatpush.bf16.msra.mxu0 %v430
    %582 = vmatmul.bf16.gmra.mxu0 %v103
    %v583 = vpop.f32.mrf.mxu0
    %v584 = vadd.f32 %v188, %v583
    %v585 = vpop.f32.mrf.mxu0
    %v586 = vadd.f32 %v188, %v585
    %587 = vdwg.mxu0
    %588 = vmatpush.bf16.msra.mxu0 %v494
    %589 = vmatpush.bf16.msra.mxu0 %v485
    %590 = vmatpush.bf16.msra.mxu0 %v476
    %591 = vmatpush.bf16.msra.mxu0 %v467
    %592 = vmatpush.bf16.msra.mxu0 %v458
    %593 = vmatpush.bf16.msra.mxu0 %v449
    %594 = vmatpush.bf16.msra.mxu0 %v440
    %595 = vmatpush.bf16.msra.mxu0 %v431
    %596 = vmatmul.bf16.gmra.mxu0 %v103
    %v597 = vpop.f32.mrf.mxu0
    %v598 = vadd.f32 %v189, %v597
    %v599 = vpop.f32.mrf.mxu0
    %v600 = vadd.f32 %v189, %v599
    %601 = vdwg.mxu0
    %602 = vmatpush.bf16.msra.mxu0 %v495
    %603 = vmatpush.bf16.msra.mxu0 %v486
    %604 = vmatpush.bf16.msra.mxu0 %v477
    %605 = vmatpush.bf16.msra.mxu0 %v468
    %606 = vmatpush.bf16.msra.mxu0 %v459
    %607 = vmatpush.bf16.msra.mxu0 %v450
    %608 = vmatpush.bf16.msra.mxu0 %v441
    %609 = vmatpush.bf16.msra.mxu0 %v432
    %610 = vmatmul.bf16.gmra.mxu0 %v103
    %v611 = vpop.f32.mrf.mxu0
    %v612 = vadd.f32 %v190, %v611
    %v613 = vpop.f32.mrf.mxu0
    %v614 = vadd.f32 %v190, %v613
    %615 = vdwg.mxu0
    %616 = vmatpush.bf16.msra.mxu0 %v496
    %617 = vmatpush.bf16.msra.mxu0 %v487
    %618 = vmatpush.bf16.msra.mxu0 %v478
    %619 = vmatpush.bf16.msra.mxu0 %v469
    %620 = vmatpush.bf16.msra.mxu0 %v460
    %621 = vmatpush.bf16.msra.mxu0 %v451
    %622 = vmatpush.bf16.msra.mxu0 %v442
    %623 = vmatpush.bf16.msra.mxu0 %v433
    %624 = vmatmul.bf16.gmra.mxu0 %v103
    %v625 = vpop.f32.mrf.mxu0
    %v626 = vadd.f32 %v191, %v625
    %v627 = vpop.f32.mrf.mxu0
    %v628 = vadd.f32 %v191, %v627
    %629 = vdwg.mxu0
    %630 = vmatpush.bf16.msra.mxu0 %v497
    %631 = vmatpush.bf16.msra.mxu0 %v488
    %632 = vmatpush.bf16.msra.mxu0 %v479
    %633 = vmatpush.bf16.msra.mxu0 %v470
    %634 = vmatpush.bf16.msra.mxu0 %v461
    %635 = vmatpush.bf16.msra.mxu0 %v452
    %636 = vmatpush.bf16.msra.mxu0 %v443
    %637 = vmatpush.bf16.msra.mxu0 %v434
    %638 = vmatmul.bf16.gmra.mxu0 %v103
    %v639 = vpop.f32.mrf.mxu0
    %v640 = vadd.f32 %v192, %v639
    %v641 = vpop.f32.mrf.mxu0
    %v642 = vadd.f32 %v192, %v641
    %643 = vdwg.mxu0
    %644 = vmatpush.bf16.msra.mxu0 %v498
    %645 = vmatpush.bf16.msra.mxu0 %v489
    %646 = vmatpush.bf16.msra.mxu0 %v480
    %647 = vmatpush.bf16.msra.mxu0 %v471
    %648 = vmatpush.bf16.msra.mxu0 %v462
    %649 = vmatpush.bf16.msra.mxu0 %v453
    %650 = vmatpush.bf16.msra.mxu0 %v444
    %651 = vmatpush.bf16.msra.mxu0 %v435
    %652 = vmatmul.bf16.gmra.mxu0 %v103
    %v653 = vpop.f32.mrf.mxu0
    %v654 = vadd.f32 %v193, %v653
    %v655 = vpop.f32.mrf.mxu0
    %v656 = vadd.f32 %v193, %v655
    %657 = vdwg.mxu0
    %658 = vmatpush.bf16.msra.mxu0 %v499
    %659 = vmatpush.bf16.msra.mxu0 %v490
    %660 = vmatpush.bf16.msra.mxu0 %v481
    %661 = vmatpush.bf16.msra.mxu0 %v472
    %662 = vmatpush.bf16.msra.mxu0 %v463
    %663 = vmatpush.bf16.msra.mxu0 %v454
    %664 = vmatpush.bf16.msra.mxu0 %v445
    %665 = vmatpush.bf16.msra.mxu0 %v436
    %666 = vmatmul.bf16.gmra.mxu0 %v103
    %v667 = vpop.f32.mrf.mxu0
    %v668 = vadd.f32 %v194, %v667
    %v669 = vpop.f32.mrf.mxu0
    %v670 = vadd.f32 %v194, %v669
    %671 = vdwg.mxu0
    %672 = vmatpush.bf16.msra.mxu0 %v500
    %673 = vmatpush.bf16.msra.mxu0 %v491
    %674 = vmatpush.bf16.msra.mxu0 %v482
    %675 = vmatpush.bf16.msra.mxu0 %v473
    %676 = vmatpush.bf16.msra.mxu0 %v464
    %677 = vmatpush.bf16.msra.mxu0 %v455
    %678 = vmatpush.bf16.msra.mxu0 %v446
    %679 = vmatpush.bf16.msra.mxu0 %v437
    %680 = vmatmul.bf16.gmra.mxu0 %v103
    %v681 = vpop.f32.mrf.mxu0
    %v682 = vadd.f32 %v195, %v681
    %v683 = vpop.f32.mrf.mxu0
    %v684 = vadd.f32 %v195, %v683
    %685 = vdwg.mxu0
    %686 = vmatpush.bf16.msra.mxu0 %v501
    %687 = vmatpush.bf16.msra.mxu0 %v492
    %688 = vmatpush.bf16.msra.mxu0 %v483
    %689 = vmatpush.bf16.msra.mxu0 %v474
    %690 = vmatpush.bf16.msra.mxu0 %v465
    %691 = vmatpush.bf16.msra.mxu0 %v456
    %692 = vmatpush.bf16.msra.mxu0 %v447
    %693 = vmatpush.bf16.msra.mxu0 %v438
    %694 = vmatmul.bf16.gmra.mxu0 %v103
    %v695 = vpop.f32.mrf.mxu0
    %v696 = vadd.f32 %v196, %v695
    %v697 = vpop.f32.mrf.mxu0
    %v698 = vadd.f32 %v196, %v697
    %699 = vdwg.mxu0
    %v700 = vpack.c.bf16 %v598, %v584
    %v701 = vpack.c.bf16 %v612, %v612
    %v702 = vpack.c.bf16 %v600, %v586
    %v703 = vpack.c.bf16 %v614, %v614
    %v704 = vpack.c.bf16 %v640, %v626
    %v705 = vpack.c.bf16 %v654, %v654
    %v706 = vpack.c.bf16 %v642, %v628
    %v707 = vpack.c.bf16 %v656, %v656
    %v708 = vld [vmem:[#allocation2] sm:$0xf]
    %v709 = vld [vmem:[#allocation2 + $0x4] sm:$0xf]
    %v710 = vld [vmem:[#allocation5] sm:$0xf]
    %v711 = vld [vmem:[#allocation5 + $0x4] sm:$0xf]
    %v714 = vunpack.c.l.b16 %v704
    %v715 = vunpack.c.h.b16 %v704
    %v716 = vunpack.c.l.b16 %v705
    %v717 = vpack.c.b16 %v714, %v714
    %v718 = vpack.c.b16 %v715, %v715
    %v719 = vpack.c.b16 %v716, %v716
    %vm720 = vcmask 64512
    %v722 = vsel %vm720, %v710, 0
    %vm724 = vcmask 1043456
    %v726 = vsel %vm724, %v717, 0
    %v729 = vsel %vm724, %v718, 0
    %v732 = vsel %vm724, %v719, 0
    %734 = vmatpush.bf16.msra.mxu0 0
    %735 = vmatpush.bf16.msra.mxu0 0
    %736 = vmatpush.bf16.msra.mxu0 0
    %737 = vmatpush.bf16.msra.mxu0 0
    %738 = vmatpush.bf16.msra.mxu0 0
    %739 = vmatpush.bf16.msra.mxu0 0
    %740 = vmatpush.bf16.msra.mxu0 0
    %741 = vmatpush.bf16.msra.mxu0 %v726
    %742 = vmatmul.bf16.gmra.mxu0 %v722
    %v743 = vpop.f32.mrf.mxu0
    %v744 = vadd.f32 0.0, %v743
    %v745 = vpop.f32.mrf.mxu0
    %746 = vdwg.mxu0
    %747 = vmatpush.bf16.msra.mxu0 0
    %748 = vmatpush.bf16.msra.mxu0 0
    %749 = vmatpush.bf16.msra.mxu0 0
    %750 = vmatpush.bf16.msra.mxu0 0
    %751 = vmatpush.bf16.msra.mxu0 0
    %752 = vmatpush.bf16.msra.mxu0 0
    %753 = vmatpush.bf16.msra.mxu0 0
    %754 = vmatpush.bf16.msra.mxu0 %v729
    %755 = vmatmul.bf16.gmra.mxu0 %v722
    %v756 = vpop.f32.mrf.mxu0
    %v757 = vadd.f32 0.0, %v756
    %v758 = vpop.f32.mrf.mxu0
    %759 = vdwg.mxu0
    %760 = vmatpush.bf16.msra.mxu0 0
    %761 = vmatpush.bf16.msra.mxu0 0
    %762 = vmatpush.bf16.msra.mxu0 0
    %763 = vmatpush.bf16.msra.mxu0 0
    %764 = vmatpush.bf16.msra.mxu0 0
    %765 = vmatpush.bf16.msra.mxu0 0
    %766 = vmatpush.bf16.msra.mxu0 0
    %767 = vmatpush.bf16.msra.mxu0 %v732
    %768 = vmatmul.bf16.gmra.mxu0 %v722
    %v769 = vpop.f32.mrf.mxu0
    %v770 = vadd.f32 0.0, %v769
    %v771 = vpop.f32.mrf.mxu0
    %772 = vdwg.mxu0
    %v775 = vunpack.c.l.b16 %v706
    %v776 = vunpack.c.h.b16 %v706
    %v777 = vunpack.c.l.b16 %v707
    %v778 = vpack.c.b16 %v775, %v775
    %v779 = vpack.c.b16 %v776, %v776
    %v780 = vpack.c.b16 %v777, %v777
    %v782 = vsel %vm720, %v711, 0
    %v785 = vsel %vm724, %v778, 0
    %v788 = vsel %vm724, %v779, 0
    %v791 = vsel %vm724, %v780, 0
    %793 = vmatpush.bf16.msra.mxu0 0
    %794 = vmatpush.bf16.msra.mxu0 0
    %795 = vmatpush.bf16.msra.mxu0 0
    %796 = vmatpush.bf16.msra.mxu0 0
    %797 = vmatpush.bf16.msra.mxu0 0
    %798 = vmatpush.bf16.msra.mxu0 0
    %799 = vmatpush.bf16.msra.mxu0 0
    %800 = vmatpush.bf16.msra.mxu0 %v785
    %801 = vmatmul.bf16.gmra.mxu0 %v782
    %v802 = vpop.f32.mrf.mxu0
    %v803 = vadd.f32 0.0, %v802
    %v804 = vpop.f32.mrf.mxu0
    %805 = vdwg.mxu0
    %806 = vmatpush.bf16.msra.mxu0 0
    %807 = vmatpush.bf16.msra.mxu0 0
    %808 = vmatpush.bf16.msra.mxu0 0
    %809 = vmatpush.bf16.msra.mxu0 0
    %810 = vmatpush.bf16.msra.mxu0 0
    %811 = vmatpush.bf16.msra.mxu0 0
    %812 = vmatpush.bf16.msra.mxu0 0
    %813 = vmatpush.bf16.msra.mxu0 %v788
    %814 = vmatmul.bf16.gmra.mxu0 %v782
    %v815 = vpop.f32.mrf.mxu0
    %v816 = vadd.f32 0.0, %v815
    %v817 = vpop.f32.mrf.mxu0
    %818 = vdwg.mxu0
    %819 = vmatpush.bf16.msra.mxu0 0
    %820 = vmatpush.bf16.msra.mxu0 0
    %821 = vmatpush.bf16.msra.mxu0 0
    %822 = vmatpush.bf16.msra.mxu0 0
    %823 = vmatpush.bf16.msra.mxu0 0
    %824 = vmatpush.bf16.msra.mxu0 0
    %825 = vmatpush.bf16.msra.mxu0 0
    %826 = vmatpush.bf16.msra.mxu0 %v791
    %827 = vmatmul.bf16.gmra.mxu0 %v782
    %v828 = vpop.f32.mrf.mxu0
    %v829 = vadd.f32 0.0, %v828
    %v830 = vpop.f32.mrf.mxu0
    %831 = vdwg.mxu0
    %v834 = vunpack.c.l.b16 %v700
    %v835 = vunpack.c.h.b16 %v700
    %v836 = vunpack.c.l.b16 %v701
    %v837 = vpack.c.b16 %v834, %v834
    %v838 = vpack.c.b16 %v835, %v835
    %v839 = vpack.c.b16 %v836, %v836
    %v841 = vsel %vm720, %v708, 0
    %v844 = vsel %vm724, %v837, 0
    %v847 = vsel %vm724, %v838, 0
    %v850 = vsel %vm724, %v839, 0
    %852 = vmatpush.bf16.msra.mxu0 0
    %853 = vmatpush.bf16.msra.mxu0 0
    %854 = vmatpush.bf16.msra.mxu0 0
    %855 = vmatpush.bf16.msra.mxu0 0
    %856 = vmatpush.bf16.msra.mxu0 0
    %857 = vmatpush.bf16.msra.mxu0 0
    %858 = vmatpush.bf16.msra.mxu0 0
    %859 = vmatpush.bf16.msra.mxu0 %v844
    %860 = vmatmul.bf16.gmra.mxu0 %v841
    %v861 = vpop.f32.mrf.mxu0
    %v862 = vadd.f32 %v744, %v861
    %v863 = vpop.f32.mrf.mxu0
    %864 = vdwg.mxu0
    %865 = vmatpush.bf16.msra.mxu0 0
    %866 = vmatpush.bf16.msra.mxu0 0
    %867 = vmatpush.bf16.msra.mxu0 0
    %868 = vmatpush.bf16.msra.mxu0 0
    %869 = vmatpush.bf16.msra.mxu0 0
    %870 = vmatpush.bf16.msra.mxu0 0
    %871 = vmatpush.bf16.msra.mxu0 0
    %872 = vmatpush.bf16.msra.mxu0 %v847
    %873 = vmatmul.bf16.gmra.mxu0 %v841
    %v874 = vpop.f32.mrf.mxu0
    %v875 = vadd.f32 %v757, %v874
    %v876 = vpop.f32.mrf.mxu0
    %877 = vdwg.mxu0
    %878 = vmatpush.bf16.msra.mxu0 0
    %879 = vmatpush.bf16.msra.mxu0 0
    %880 = vmatpush.bf16.msra.mxu0 0
    %881 = vmatpush.bf16.msra.mxu0 0
    %882 = vmatpush.bf16.msra.mxu0 0
    %883 = vmatpush.bf16.msra.mxu0 0
    %884 = vmatpush.bf16.msra.mxu0 0
    %885 = vmatpush.bf16.msra.mxu0 %v850
    %886 = vmatmul.bf16.gmra.mxu0 %v841
    %v887 = vpop.f32.mrf.mxu0
    %v888 = vadd.f32 %v770, %v887
    %v889 = vpop.f32.mrf.mxu0
    %890 = vdwg.mxu0
    %v893 = vunpack.c.l.b16 %v702
    %v894 = vunpack.c.h.b16 %v702
    %v895 = vunpack.c.l.b16 %v703
    %v896 = vpack.c.b16 %v893, %v893
    %v897 = vpack.c.b16 %v894, %v894
    %v898 = vpack.c.b16 %v895, %v895
    %v900 = vsel %vm720, %v709, 0
    %v903 = vsel %vm724, %v896, 0
    %v906 = vsel %vm724, %v897, 0
    %v909 = vsel %vm724, %v898, 0
    %911 = vmatpush.bf16.msra.mxu0 0
    %912 = vmatpush.bf16.msra.mxu0 0
    %913 = vmatpush.bf16.msra.mxu0 0
    %914 = vmatpush.bf16.msra.mxu0 0
    %915 = vmatpush.bf16.msra.mxu0 0
    %916 = vmatpush.bf16.msra.mxu0 0
    %917 = vmatpush.bf16.msra.mxu0 0
    %918 = vmatpush.bf16.msra.mxu0 %v903
    %919 = vmatmul.bf16.gmra.mxu0 %v900
    %v920 = vpop.f32.mrf.mxu0
    %v921 = vadd.f32 %v803, %v920
    %v922 = vpop.f32.mrf.mxu0
    %923 = vdwg.mxu0
    %924 = vmatpush.bf16.msra.mxu0 0
    %925 = vmatpush.bf16.msra.mxu0 0
    %926 = vmatpush.bf16.msra.mxu0 0
    %927 = vmatpush.bf16.msra.mxu0 0
    %928 = vmatpush.bf16.msra.mxu0 0
    %929 = vmatpush.bf16.msra.mxu0 0
    %930 = vmatpush.bf16.msra.mxu0 0
    %931 = vmatpush.bf16.msra.mxu0 %v906
    %932 = vmatmul.bf16.gmra.mxu0 %v900
    %v933 = vpop.f32.mrf.mxu0
    %v934 = vadd.f32 %v816, %v933
    %v935 = vpop.f32.mrf.mxu0
    %936 = vdwg.mxu0
    %937 = vmatpush.bf16.msra.mxu0 0
    %938 = vmatpush.bf16.msra.mxu0 0
    %939 = vmatpush.bf16.msra.mxu0 0
    %940 = vmatpush.bf16.msra.mxu0 0
    %941 = vmatpush.bf16.msra.mxu0 0
    %942 = vmatpush.bf16.msra.mxu0 0
    %943 = vmatpush.bf16.msra.mxu0 0
    %944 = vmatpush.bf16.msra.mxu0 %v909
    %945 = vmatmul.bf16.gmra.mxu0 %v900
    %v946 = vpop.f32.mrf.mxu0
    %v947 = vadd.f32 %v829, %v946
    %v948 = vpop.f32.mrf.mxu0
    %949 = vdwg.mxu0
    %v950 = vld [vmem:[%s5] sm:$0x7]
    %v952 = vperm.slane %v950, 0
    %v953 = vperm.slane %v950, 1
    %v954 = vperm.slane %v950, 2
    %v958 = vadd.f32 %v862, %v952
    %v959 = vadd.f32 %v875, %v953
    %v960 = vadd.f32 %v888, %v954
    %v961 = vadd.f32 %v921, %v952
    %v962 = vadd.f32 %v934, %v953
    %v963 = vadd.f32 %v947, %v954
    %v964 = vadd.f32 %v958, %v668
    %v965 = vadd.f32 %v961, %v670
    %v966 = vxor.u32 %v964, 2147483648
    %v967 = vxor.u32 %v965, 2147483648
    %v968 = vmul.f32 %v966, 1.442695
    %v969 = vpow.pop %v968
    %v970 = vmul.f32 %v967, 1.442695
    %v971 = vpow.pop %v970
    %v972 = vadd.f32 %v969, 1.0
    %v973 = vadd.f32 %v971, 1.0
    %v974 = vrcp.pop %v972
    %v975 = vmul.f32 %v972, %v974
    %v976 = vsub.f32 1.0, %v975
    %v977 = vmul.f32 %v974, %v976
    %v978 = vadd.f32 %v974, %v977
    %vm979 = vweird.f32 %v972
    %vm980 = vweird.f32 %v974
    %vm981 = vmor %vm979, %vm980
    %v982 = vsel %vm981, %v974, %v978
    %v983 = vand.u32 2147483647, %v972
    %vm984 = vcmp.eq.f32.partialorder %v983, 8.507059e+37
    %v985 = vand.u32 %v972, 2147483648
    %v986 = vor.u32 1.1754944e-38, %v985
    %v987 = vsel %vm984, %v986, %v982
    %v988 = vmul.f32 1.0, %v987
    %v989 = vrcp.pop %v973
    %v990 = vmul.f32 %v973, %v989
    %v991 = vsub.f32 1.0, %v990
    %v992 = vmul.f32 %v989, %v991
    %v993 = vadd.f32 %v989, %v992
    %vm994 = vweird.f32 %v973
    %vm995 = vweird.f32 %v989
    %vm996 = vmor %vm994, %vm995
    %v997 = vsel %vm996, %v989, %v993
    %v998 = vand.u32 2147483647, %v973
    %vm999 = vcmp.eq.f32.partialorder %v998, 8.507059e+37
    %v1000 = vand.u32 %v973, 2147483648
    %v1001 = vor.u32 1.1754944e-38, %v1000
    %v1002 = vsel %vm999, %v1001, %v997
    %v1003 = vmul.f32 1.0, %v1002
    %v1004 = vadd.f32 %v959, %v682
    %v1005 = vadd.f32 %v962, %v684
    %v1006 = vxor.u32 %v1004, 2147483648
    %v1007 = vxor.u32 %v1005, 2147483648
    %v1008 = vmul.f32 %v1006, 1.442695
    %v1009 = vpow.pop %v1008
    %v1010 = vmul.f32 %v1007, 1.442695
    %v1011 = vpow.pop %v1010
    %v1012 = vadd.f32 %v1009, 1.0
    %v1013 = vadd.f32 %v1011, 1.0
    %v1014 = vrcp.pop %v1012
    %v1015 = vmul.f32 %v1012, %v1014
    %v1016 = vsub.f32 1.0, %v1015
    %v1017 = vmul.f32 %v1014, %v1016
    %v1018 = vadd.f32 %v1014, %v1017
    %vm1019 = vweird.f32 %v1012
    %vm1020 = vweird.f32 %v1014
    %vm1021 = vmor %vm1019, %vm1020
    %v1022 = vsel %vm1021, %v1014, %v1018
    %v1023 = vand.u32 2147483647, %v1012
    %vm1024 = vcmp.eq.f32.partialorder %v1023, 8.507059e+37
    %v1025 = vand.u32 %v1012, 2147483648
    %v1026 = vor.u32 1.1754944e-38, %v1025
    %v1027 = vsel %vm1024, %v1026, %v1022
    %v1028 = vmul.f32 1.0, %v1027
    %v1029 = vrcp.pop %v1013
    %v1030 = vmul.f32 %v1013, %v1029
    %v1031 = vsub.f32 1.0, %v1030
    %v1032 = vmul.f32 %v1029, %v1031
    %v1033 = vadd.f32 %v1029, %v1032
    %vm1034 = vweird.f32 %v1013
    %vm1035 = vweird.f32 %v1029
    %vm1036 = vmor %vm1034, %vm1035
    %v1037 = vsel %vm1036, %v1029, %v1033
    %v1038 = vand.u32 2147483647, %v1013
    %vm1039 = vcmp.eq.f32.partialorder %v1038, 8.507059e+37
    %v1040 = vand.u32 %v1013, 2147483648
    %v1041 = vor.u32 1.1754944e-38, %v1040
    %v1042 = vsel %vm1039, %v1041, %v1037
    %v1043 = vmul.f32 1.0, %v1042
    %v1044 = vmul.f32 %v988, %v696
    %v1045 = vmul.f32 %v1003, %v698
    %v1046 = vadd.f32 %v960, %v1044
    %v1047 = vadd.f32 %v963, %v1045
    %v1048 = vtanh.pop %v1046
    %v1049 = vtanh.pop %v1047
    %v1050 = vsub.f32 %v101, %v1048
    %v1051 = vsub.f32 %v102, %v1049
    %v1052 = vmul.f32 %v1028, %v1050
    %v1053 = vmul.f32 %v1043, %v1051
    %v1054 = vsub.f32 %v101, %v1052
    %v1055 = vsub.f32 %v102, %v1053
    %1056 = vst [vmem:[#allocation11] sm:$0xff] %v1054
    %1057 = vst [vmem:[#allocation11 + $0x8] sm:$0xff] %v1055
    // Predicated region
    $region46: #{tpu_custom_call.1} parent=1 // pred_check
      _
    $region47: #{tpu_custom_call.1} parent=1 // pred_check_branch
      %1059 = sbr.rel (0) target = $region49
    $region48: #{tpu_custom_call.1} parent=1 // pred_region
      %1061 = vsyncadd [#allocation4], 0
      %s1062 = sshll.u32 [#allocation11], 4
      %s1063 = int_to_ptr.vmem [resolvable:$true] %s1062
      %s1064 = sshll.u32 %s6, 4
      %s1065 = int_to_ptr.hbm [resolvable:$true] %s1064
      %1070 = dma.vmem_to_hbm [thread:$0]  %s1063, 256, %s1065, [#allocation4], 128, 128, 8
    $region49: #{tpu_custom_call.1} parent=1 // pred_fallthru
      _
    // Predicated region
    $region50: #{tpu_custom_call.1} parent=1 // pred_check
      _
    $region51: #{tpu_custom_call.1} parent=1 // pred_check_branch
      %1072 = sbr.rel (0) target = $region53
    $region52: #{tpu_custom_call.1} parent=1 // pred_region
      %1074 = dma.done [#allocation4], 256
    $region53: #{tpu_custom_call.1} parent=1 // pred_fallthru
      _
    %1075 = vsyncpa [#allocation3], 1
    %1076 = vsyncpa [#allocation6], 1
    %1077 = vsyncpa [#allocation9], 1
    %1078 = vsyncpa [#allocation4], 1

</llo_original>
